<compile_context>
chip_gen: v5e
topology: v5e:2x2
jax: 0.10.0
libtpu: 0.0.40
codegen_flags: <defaults>
</compile_context>

<pallas_src>
import functools
import math

import jax
import jax.numpy as jnp
from jax.experimental import pallas as pl
from jax.experimental.pallas import tpu as pltpu


_VMEM_LIMIT = 48 * 1024 * 1024  # bytes; <= v7x physical (64 MiB), raises v5e/v6e default


# ----------------------------------------------------------------------------- helpers
def _layernorm(x, gamma, beta, eps=1e-5):
    mean = jnp.mean(x, axis=-1, keepdims=True)
    var = jnp.mean((x - mean) ** 2, axis=-1, keepdims=True)
    return (x - mean) * jax.lax.rsqrt(var + eps) * gamma + beta


# ----------------------------------------------------------------------------- kernels
def linear_kernel(x_ref, w_ref, b_ref, o_ref):
    # x: (TM, K), w: (K, N), b: (1, N)
    o_ref[...] = (
        jnp.dot(x_ref[...], w_ref[...], preferred_element_type=jnp.float32)
        + b_ref[...]
    )


def _attn_head_step(x, wq_ref, wk_ref, wv_ref, bq_ref, bk_ref, bv_ref, wo_ref,
                    acc_ref, *, scale):
    """One head of self-attention for one batch element; accumulates o_h @ Wo[h]."""
    q = jnp.dot(x, wq_ref[0], preferred_element_type=jnp.float32) + bq_ref[0]
    k = jnp.dot(x, wk_ref[0], preferred_element_type=jnp.float32) + bk_ref[0]
    v = jnp.dot(x, wv_ref[0], preferred_element_type=jnp.float32) + bv_ref[0]
    s = jnp.dot(q, k.T, preferred_element_type=jnp.float32) * scale
    s = s - jnp.max(s, axis=-1, keepdims=True)
    e = jnp.exp(s)
    # normalization on the EUP (approx reciprocal) instead of a VALU divide
    p = e * pl.reciprocal(jnp.sum(e, axis=-1, keepdims=True), approx=True)
    o = jnp.dot(p, v, preferred_element_type=jnp.float32)
    acc_ref[...] += jnp.dot(o, wo_ref[0], preferred_element_type=jnp.float32)


def _mlp_and_norms(x, attn_acc, bo_ref, w1_ref, b1_ref, w2_ref, b2_ref,
                   g1_ref, be1_ref, g2_ref, be2_ref):
    """residual + LN1 + ReLU FFN + residual + LN2 (post-norm encoder layer tail)."""
    x1 = _layernorm(x + attn_acc + bo_ref[...], g1_ref[...], be1_ref[...])
    h1 = jnp.maximum(
        jnp.dot(x1, w1_ref[...], preferred_element_type=jnp.float32) + b1_ref[...],
        0.0)
    ffn = jnp.dot(h1, w2_ref[...], preferred_element_type=jnp.float32) + b2_ref[...]
    return _layernorm(x1 + ffn, g2_ref[...], be2_ref[...])


def encoder_layer_kernel(x_ref, wq_ref, wk_ref, wv_ref, bq_ref, bk_ref, bv_ref,
                         wo_ref, bo_ref, w1_ref, b1_ref, w2_ref, b2_ref,
                         g1_ref, be1_ref, g2_ref, be2_ref,
                         o_ref, acc_ref, *, scale):
    """grid = (batch, heads); attention accumulated over heads, FFN at last head."""
    h = pl.program_id(1)

    @pl.when(h == 0)
    def _():
        acc_ref[...] = jnp.zeros_like(acc_ref)

    x = x_ref[0]                                            # (S, D)
    _attn_head_step(x, wq_ref, wk_ref, wv_ref, bq_ref, bk_ref, bv_ref, wo_ref,
                    acc_ref, scale=scale)

    @pl.when(h == pl.num_programs(1) - 1)
    def _():
        o_ref[0] = _mlp_and_norms(x, acc_ref[...], bo_ref, w1_ref, b1_ref,
                                  w2_ref, b2_ref, g1_ref, be1_ref, g2_ref, be2_ref)


def encoder_final_kernel(x_ref, wq_ref, wk_ref, wv_ref, bq_ref, bk_ref, bv_ref,
                         wo_ref, bo_ref, w1_ref, b1_ref, w2_ref, b2_ref,
                         g1_ref, be1_ref, g2_ref, be2_ref, ow_ref, ob_ref,
                         o_ref, acc_ref, *, scale, inv_seq):
    """Last encoder layer fused with mean-pool over seq and the output projection."""
    h = pl.program_id(1)

    @pl.when(h == 0)
    def _():
        acc_ref[...] = jnp.zeros_like(acc_ref)

    x = x_ref[0]                                            # (S, D)
    _attn_head_step(x, wq_ref, wk_ref, wv_ref, bq_ref, bk_ref, bv_ref, wo_ref,
                    acc_ref, scale=scale)

    @pl.when(h == pl.num_programs(1) - 1)
    def _():
        y = _mlp_and_norms(x, acc_ref[...], bo_ref, w1_ref, b1_ref,
                           w2_ref, b2_ref, g1_ref, be1_ref, g2_ref, be2_ref)
        pooled = jnp.sum(y, axis=0, keepdims=True) * inv_seq        # (1, D)
        o_ref[0] = (jnp.dot(pooled, ow_ref[...], preferred_element_type=jnp.float32)
                    + ob_ref[...])


# ----------------------------------------------------------------------------- wrappers
def pallas_linear(x2d, w, b, *, tm=256):
    M, K = x2d.shape
    N = w.shape[1]
    tm = min(tm, M)
    return pl.pallas_call(
        linear_kernel,
        out_shape=jax.ShapeDtypeStruct((M, N), jnp.float32),
        grid=(pl.cdiv(M, tm),),
        in_specs=[pl.BlockSpec((tm, K), lambda i: (i, 0)),
                  pl.BlockSpec((K, N), lambda i: (0, 0)),
                  pl.BlockSpec((1, N), lambda i: (0, 0))],
        out_specs=pl.BlockSpec((tm, N), lambda i: (i, 0)),
        compiler_params=pltpu.CompilerParams(
            dimension_semantics=("parallel",),
            vmem_limit_bytes=_VMEM_LIMIT),
    )(x2d, w, b)


def _prep_layer(layer, num_heads):
    """Split packed QKV / output-projection weights to a leading head axis (plain XLA)."""
    wqkv, bqkv, wo, bo, w1, b1, w2, b2, g1, be1, g2, be2 = layer
    D = wo.shape[0]
    hd = D // num_heads

    def split_w(w):      # (D, D) -> (H, D, hd)
        return w.reshape(D, num_heads, hd).transpose(1, 0, 2)

    def split_b(b):      # (1, D) -> (H, 1, hd)
        return b.reshape(num_heads, 1, hd)

    wq, wk, wv = (split_w(wqkv[:, i * D:(i + 1) * D]) for i in range(3))
    bq, bk, bv = (split_b(bqkv[:, i * D:(i + 1) * D]) for i in range(3))
    wo_h = wo.reshape(num_heads, hd, D)                    # concat(o_h)@Wo == sum o_h@Wo[h]
    return (wq, wk, wv, bq, bk, bv, wo_h, bo, w1, b1, w2, b2, g1, be1, g2, be2)


def pallas_encoder_layer(x, lp, num_heads, out_proj=None):
    B, S, D = x.shape
    hd = D // num_heads
    ffn_dim = lp[8].shape[1]          # w1: (D, ffn_dim)
    scale = 1.0 / math.sqrt(hd)

    def head_spec(shape):
        return pl.BlockSpec(shape, lambda b, h: (h, 0, 0))

    def shared_spec(shape):
        return pl.BlockSpec(shape, lambda b, h: (0, 0))

    in_specs = [
        pl.BlockSpec((1, S, D), lambda b, h: (b, 0, 0)),    # x (resident across heads)
        head_spec((1, D, hd)), head_spec((1, D, hd)), head_spec((1, D, hd)),  # wq wk wv
        head_spec((1, 1, hd)), head_spec((1, 1, hd)), head_spec((1, 1, hd)),  # bq bk bv
        head_spec((1, hd, D)),                              # wo (per-head slab)
        shared_spec((1, D)),                                # bo
        shared_spec((D, ffn_dim)), shared_spec((1, ffn_dim)),   # w1 b1
        shared_spec((ffn_dim, D)), shared_spec((1, D)),         # w2 b2
        shared_spec((1, D)), shared_spec((1, D)),               # g1 be1
        shared_spec((1, D)), shared_spec((1, D)),               # g2 be2
    ]
    operands = (x,) + tuple(lp)

    compiler_params = pltpu.CompilerParams(
        dimension_semantics=("parallel", "arbitrary"),
        vmem_limit_bytes=_VMEM_LIMIT)
    scratch = [pltpu.VMEM((S, D), jnp.float32)]             # attention accumulator

    if out_proj is None:
        kernel = functools.partial(encoder_layer_kernel, scale=scale)
        return pl.pallas_call(
            kernel,
            out_shape=jax.ShapeDtypeStruct((B, S, D), jnp.float32),
            grid=(B, num_heads),
            in_specs=in_specs,
            out_specs=pl.BlockSpec((1, S, D), lambda b, h: (b, 0, 0)),
            scratch_shapes=scratch,
            compiler_params=compiler_params,
        )(*operands)

    out_w, out_b = out_proj
    wd = out_w.shape[1]
    kernel = functools.partial(encoder_final_kernel, scale=scale, inv_seq=1.0 / S)
    in_specs = in_specs + [shared_spec((D, wd)), shared_spec((1, wd))]
    operands = operands + (out_w, out_b)
    out = pl.pallas_call(
        kernel,
        out_shape=jax.ShapeDtypeStruct((B, 1, wd), jnp.float32),
        grid=(B, num_heads),
        in_specs=in_specs,
        out_specs=pl.BlockSpec((1, 1, wd), lambda b, h: (b, 0, 0)),
        scratch_shapes=scratch,
        compiler_params=compiler_params,
    )(*operands)
    return out.reshape(B, wd)


def hyper_transformer_forward(x, params):
    """x: (B, S, input_dim) float32 -> (B, weight_dim) float32."""
    B, S, input_dim = x.shape
    D = params["embed_w"].shape[1]
    H = params["num_heads"]

    h = pallas_linear(x.reshape(B * S, input_dim), params["embed_w"], params["embed_b"])
    h = h.reshape(B, S, D)

    layers = [_prep_layer(lp, H) for lp in params["layers"]]
    for lp in layers[:-1]:
        h = pallas_encoder_layer(h, lp, H)
    # last layer fused with mean-pool + output projection (saves a (B,S,D) HBM trip)
    return pallas_encoder_layer(h, layers[-1], H,
                                out_proj=(params["out_w"], params["out_b"]))


# ----------------------------------------------------------------------------- params
def init_params(key, input_dim, model_dim, num_layers, num_heads, weight_dim,
                ffn_dim=2048):
    keys = iter(jax.random.split(key, 4 + 8 * num_layers))

    def lin(fan_in, fan_out):
        w = jax.random.normal(next(keys), (fan_in, fan_out), jnp.float32) * 0.02
        b = jax.random.normal(next(keys), (1, fan_out), jnp.float32) * 0.02
        return w, b

    embed_w, embed_b = lin(input_dim, model_dim)
    out_w, out_b = lin(model_dim, weight_dim)

    layers = []
    for _ in range(num_layers):
        wqkv, bqkv = lin(model_dim, 3 * model_dim)
        wo, bo = lin(model_dim, model_dim)
        w1, b1 = lin(model_dim, ffn_dim)
        w2, b2 = lin(ffn_dim, model_dim)
        g1 = jnp.ones((1, model_dim), jnp.float32)
        be1 = jnp.zeros((1, model_dim), jnp.float32)
        g2 = jnp.ones((1, model_dim), jnp.float32)
        be2 = jnp.zeros((1, model_dim), jnp.float32)
        layers.append((wqkv, bqkv, wo, bo, w1, b1, w2, b2, g1, be1, g2, be2))

    return {"embed_w": embed_w, "embed_b": embed_b,
            "out_w": out_w, "out_b": out_b,
            "layers": layers, "num_heads": num_heads}


# ----------------------------------------------------------------------------- reference
def reference_forward(x, params):
    num_heads = params["num_heads"]
    B, S, _ = x.shape
    h = x.reshape(B * S, -1) @ params["embed_w"] + params["embed_b"]
    h = h.reshape(B, S, -1)
    for (wqkv, bqkv, wo, bo, w1, b1, w2, b2, g1, be1, g2, be2) in params["layers"]:
        D = h.shape[-1]
        hd = D // num_heads
        qkv = h @ wqkv + bqkv
        q, k, v = qkv[..., :D], qkv[..., D:2 * D], qkv[..., 2 * D:]
        q = q.reshape(B, S, num_heads, hd).transpose(0, 2, 1, 3)
        k = k.reshape(B, S, num_heads, hd).transpose(0, 2, 1, 3)
        v = v.reshape(B, S, num_heads, hd).transpose(0, 2, 1, 3)
        s = jnp.einsum("bhqd,bhkd->bhqk", q, k) / math.sqrt(hd)
        p = jax.nn.softmax(s, axis=-1)
        a = jnp.einsum("bhqk,bhkd->bhqd", p, v).transpose(0, 2, 1, 3).reshape(B, S, D)
        a = a @ wo + bo
        h1 = _layernorm(h + a, g1, be1)
        ff = jnp.maximum(h1 @ w1 + b1, 0.0) @ w2 + b2
        h = _layernorm(h1 + ff, g2, be2)
    pooled = h.mean(axis=1)
    return pooled @ params["out_w"] + params["out_b"]


# ----------------------------------------------------------------------------- main
if __name__ == "__main__":
    # Small shapes consistent with the module's forward: x is (batch, seq, input_dim).
    batch, seq = 2, 8
    input_dim, model_dim, num_layers, num_heads, weight_dim = 16, 32, 2, 4, 8

    key = jax.random.PRNGKey(0)
    k_x, k_p = jax.random.split(key)
    x = jax.random.normal(k_x, (batch, seq, input_dim), jnp.float32)
    params = init_params(k_p, input_dim, model_dim, num_layers, num_heads, weight_dim)

    out = jax.block_until_ready(hyper_transformer_forward(x, params))
    ref = jax.block_until_ready(reference_forward(x, params))

    assert out.shape == (batch, weight_dim), out.shape
    # Tolerance slightly looser than pure-f32 because the softmax normalization uses
    # the EUP's approximate reciprocal (pl.reciprocal(approx=True)).
    assert jnp.allclose(out, ref, atol=1e-2, rtol=1e-2), (
        float(jnp.max(jnp.abs(out - ref))))
    print("KERNEL_OK")
</pallas_src>

<mosaic_0001>
module attributes {stable_mosaic.version = 11 : i64} {
  func.func @linear_kernel(%arg0: i32, %arg1: memref<16x16xf32, #tpu.memory_space<vmem>>, %arg2: memref<16x32xf32, #tpu.memory_space<vmem>>, %arg3: memref<1x32xf32, #tpu.memory_space<vmem>>, %arg4: memref<16x32xf32, #tpu.memory_space<vmem>>) attributes {dimension_semantics = [#tpu.dimension_semantics<parallel>], iteration_bounds = array<i64: 1>, scalar_prefetch = 0 : i64, scratch_operands = 0 : i64, tpu.core_type = #tpu.core_type<tc>, window_params = [{transform_indices = @transform_0, window_bounds = array<i64: 16, 16>}, {pipeline_mode = #tpu.pipeline_mode<synchronous>, transform_indices = @transform_1, window_bounds = array<i64: 16, 32>}, {pipeline_mode = #tpu.pipeline_mode<synchronous>, transform_indices = @transform_2, window_bounds = array<i64: 1, 32>}, {transform_indices = @transform_3, window_bounds = array<i64: 16, 32>}]} {
    %c0 = arith.constant 0 : index
    %c0_0 = arith.constant 0 : index
    %0 = vector.load %arg1[%c0, %c0_0] : memref<16x16xf32, #tpu.memory_space<vmem>>, vector<16x16xf32>
    %c0_1 = arith.constant 0 : index
    %c0_2 = arith.constant 0 : index
    %1 = vector.load %arg2[%c0_1, %c0_2] : memref<16x32xf32, #tpu.memory_space<vmem>>, vector<16x32xf32>
    %cst = arith.constant dense<0.000000e+00> : vector<16x32xf32>
    %2 = tpu.matmul %0, %1, %cst {dimension_numbers = #tpu.dot_dimension_numbers<[1], [0], [0], [1], [0, 0, 1, 1], [], []>} : vector<16x16xf32>, vector<16x32xf32>, vector<16x32xf32> -> vector<16x32xf32>
    %c0_3 = arith.constant 0 : index
    %c0_4 = arith.constant 0 : index
    %3 = vector.load %arg3[%c0_3, %c0_4] : memref<1x32xf32, #tpu.memory_space<vmem>>, vector<1x32xf32>
    %4 = vector.broadcast %3 : vector<1x32xf32> to vector<16x32xf32>
    %5 = arith.addf %2, %4 : vector<16x32xf32>
    %c0_5 = arith.constant 0 : index
    %c0_6 = arith.constant 0 : index
    %6 = vector.load %arg4[%c0_5, %c0_6] : memref<16x32xf32, #tpu.memory_space<vmem>>, vector<16x32xf32>
    tpu.vector_store %arg4[%c0_5, %c0_6], %5 {strides = array<i32>} : memref<16x32xf32, #tpu.memory_space<vmem>>, vector<16x32xf32>,
    return
  }
  func.func @transform_0(%arg0: i32) -> (i32, i32) {
    %c0_i32 = arith.constant 0 : i32
    %c0_i32_0 = arith.constant 0 : i32
    return %arg0, %c0_i32 : i32, i32
  }
  func.func @transform_1(%arg0: i32) -> (i32, i32) {
    %c0_i32 = arith.constant 0 : i32
    %c0_i32_0 = arith.constant 0 : i32
    %c0_i32_1 = arith.constant 0 : i32
    return %c0_i32, %c0_i32_0 : i32, i32
  }
  func.func @transform_2(%arg0: i32) -> (i32, i32) {
    %c0_i32 = arith.constant 0 : i32
    %c0_i32_0 = arith.constant 0 : i32
    %c0_i32_1 = arith.constant 0 : i32
    return %c0_i32, %c0_i32_0 : i32, i32
  }
  func.func @transform_3(%arg0: i32) -> (i32, i32) {
    %c0_i32 = arith.constant 0 : i32
    %c0_i32_0 = arith.constant 0 : i32
    return %arg0, %c0_i32 : i32, i32
  }
}

</mosaic_0001>

<llo_original>
// kernel: tpu_custom_call.1
$region0: #{tpu_custom_call.1}
  #allocation0 [shape = 'u32[]', space=smem, size = 0x4, offset = 0x4, fixed_abs, tag = 'smem constant byte address 0x4 - core index']
  #allocation1 [shape = 'u32[72,128]{1,0:T(1,128)}', space=vmem, size = 0x9000, scoped, tag = 'internal scratch']
  %s0 = inlined_call_operand.hbm [shape: f32[16,16], index: 0, kind: input, shape index: {}]
  %s1 = inlined_call_operand.hbm [shape: f32[16,32], index: 1, kind: input, shape index: {}]
  %s2 = inlined_call_operand.vmem [shape: f32[1,32], index: 2, kind: input, shape index: {}]
  %s3 = inlined_call_operand.hbm [shape: f32[16,32], index: 3, kind: output, shape index: {}]
  %s4 = sld [smem:[#allocation0]]
  $region30: #{tpu_custom_call.1} parent=0
    _
  %s6 = ssub.s32 1, %s4
  %s7 = scalar_select 0, %s6, %s4
  $region1: #{tpu_custom_call.1} parent=0
    #allocation2 [shape = 'u8[8192]{0}', space=vmem, size = 0x2000, scoped, tag = 'input window, operand 0, single buffered']
    #allocation3 [shape = 's32[1]{0}', space=sflag, size = 0x4, scoped, tag = 'scoped memory for tpu_custom_call.1']
    #allocation4 [shape = 's32[1]{0}', space=sflag, size = 0x4, scoped, tag = 'scoped memory for tpu_custom_call.1']
    #allocation5 [shape = 'u8[8192]{0}', space=vmem, size = 0x2000, scoped, tag = 'input window, operand 1, single buffered']
    #allocation6 [shape = 's32[1]{0}', space=sflag, size = 0x4, scoped, tag = 'scoped memory for tpu_custom_call.1']
    #allocation7 [shape = 'u8[8192]{0}', space=vmem, size = 0x2000, scoped, tag = 'output window, operand 0, single buffered']
    %8 = vsyncpa [#allocation3], 0
    %9 = vsyncpa [#allocation6], 0
    %10 = vsyncpa [#allocation4], 0
    // Predicated region
    $region2: #{tpu_custom_call.1} parent=1 // pred_check
      _
    $region3: #{tpu_custom_call.1} parent=1 // pred_check_branch
      %12 = sbr.rel (0) target = $region5
    $region4: #{tpu_custom_call.1} parent=1 // pred_region
      %14 = vsyncadd [#allocation3], 0
      %s15 = sshll.u32 %s0, 4
      %s16 = int_to_ptr.hbm [resolvable:$true] %s15
      %s17 = sshll.u32 [#allocation2], 4
      %s18 = int_to_ptr.vmem [resolvable:$true] %s17
      %23 = dma.hbm_to_vmem [thread:$0]  %s16, 256, %s18, [#allocation3], 128, 128, 8
    $region5: #{tpu_custom_call.1} parent=1 // pred_fallthru
      _
    // Predicated region
    $region6: #{tpu_custom_call.1} parent=1 // pred_check
      _
    $region7: #{tpu_custom_call.1} parent=1 // pred_check_branch
      %25 = sbr.rel (0) target = $region9
    $region8: #{tpu_custom_call.1} parent=1 // pred_region
      %27 = vsyncadd [#allocation6], 0
      %s28 = sshll.u32 %s1, 4
      %s29 = int_to_ptr.hbm [resolvable:$true] %s28
      %s30 = sshll.u32 [#allocation5], 4
      %s31 = int_to_ptr.vmem [resolvable:$true] %s30
      %36 = dma.hbm_to_vmem [thread:$0]  %s29, 256, %s31, [#allocation6], 128, 128, 8
    $region9: #{tpu_custom_call.1} parent=1 // pred_fallthru
      _
    // Predicated region
    $region10: #{tpu_custom_call.1} parent=1 // pred_check
      _
    $region11: #{tpu_custom_call.1} parent=1 // pred_check_branch
      %38 = sbr.rel (0) target = $region13
    $region12: #{tpu_custom_call.1} parent=1 // pred_region
      _
    $region13: #{tpu_custom_call.1} parent=1 // pred_fallthru
      _
    // Predicated region
    $region14: #{tpu_custom_call.1} parent=1 // pred_check
      _
    $region15: #{tpu_custom_call.1} parent=1 // pred_check_branch
      %40 = sbr.rel (0) target = $region17
    $region16: #{tpu_custom_call.1} parent=1 // pred_region
      %42 = dma.done [#allocation3], 256
    $region17: #{tpu_custom_call.1} parent=1 // pred_fallthru
      _
    // Predicated region
    $region18: #{tpu_custom_call.1} parent=1 // pred_check
      _
    $region19: #{tpu_custom_call.1} parent=1 // pred_check_branch
      %44 = sbr.rel (0) target = $region21
    $region20: #{tpu_custom_call.1} parent=1 // pred_region
      %46 = dma.done [#allocation6], 256
    $region21: #{tpu_custom_call.1} parent=1 // pred_fallthru
      _
    %v47 = vld [vmem:[#allocation2] sm:$0xff]
    %v48 = vld [vmem:[#allocation2 + $0x8] sm:$0xff]
    %v49 = vld [vmem:[#allocation5] sm:$0xff]
    %v50 = vld [vmem:[#allocation5 + $0x8] sm:$0xff]
    %v51 = vld [vmem:[%s2] sm:$0x1]
    %v53 = vperm.slane %v51, 0
    %vm55 = vcmask 130048
    %v57 = vsel %vm55, %v47, 0
    %v60 = vsel %vm55, %v48, 0
    %62 = vmatpush.msra.mxu0 0.0
    %63 = vmatpush.msra.mxu0 0.0
    %64 = vmatpush.msra.mxu0 0.0
    %65 = vmatpush.msra.mxu0 0.0
    %66 = vmatpush.msra.mxu0 0.0
    %67 = vmatpush.msra.mxu0 0.0
    %68 = vmatpush.msra.mxu0 0.0
    %69 = vmatpush.msra.mxu0 0.0
    %70 = vmatpush.msra.mxu0 0.0
    %71 = vmatpush.msra.mxu0 0.0
    %72 = vmatpush.msra.mxu0 0.0
    %73 = vmatpush.msra.mxu0 0.0
    %74 = vmatpush.msra.mxu0 0.0
    %75 = vmatpush.msra.mxu0 0.0
    %76 = vmatpush.msra.mxu0 %v50
    %77 = vmatpush.msra.mxu0 %v49
    %78 = vmatmul.f32.gmra.mxu0 %v57
    %v79 = vpop.f32.mrf.mxu0
    %v80 = vadd.f32 %v53, %v79
    %81 = vmatmul.f32.gmra.mxu0 %v60
    %v82 = vpop.f32.mrf.mxu0
    %v83 = vadd.f32 %v53, %v82
    %84 = vdwg.mxu0
    %vm85 = vcmask 261120
    %86 = vst.msk [vmem:[#allocation7] sm:$0xff] %vm85, %v80
    %87 = vst.msk [vmem:[#allocation7 + $0x8] sm:$0xff] %vm85, %v83
    // Predicated region
    $region22: #{tpu_custom_call.1} parent=1 // pred_check
      _
    $region23: #{tpu_custom_call.1} parent=1 // pred_check_branch
      %89 = sbr.rel (0) target = $region25
    $region24: #{tpu_custom_call.1} parent=1 // pred_region
      %91 = vsyncadd [#allocation4], 0
      %s92 = sshll.u32 [#allocation7], 4
      %s93 = int_to_ptr.vmem [resolvable:$true] %s92
      %s94 = sshll.u32 %s3, 4
      %s95 = int_to_ptr.hbm [resolvable:$true] %s94
      %100 = dma.vmem_to_hbm [thread:$0]  %s93, 256, %s95, [#allocation4], 128, 128, 8
    $region25: #{tpu_custom_call.1} parent=1 // pred_fallthru
      _
    // Predicated region
    $region26: #{tpu_custom_call.1} parent=1 // pred_check
      _
    $region27: #{tpu_custom_call.1} parent=1 // pred_check_branch
      %102 = sbr.rel (0) target = $region29
    $region28: #{tpu_custom_call.1} parent=1 // pred_region
      %104 = dma.done [#allocation4], 256
    $region29: #{tpu_custom_call.1} parent=1 // pred_fallthru
      _
    %105 = vsyncpa [#allocation3], 1
    %106 = vsyncpa [#allocation6], 1
    %107 = vsyncpa [#allocation4], 1

</llo_original>
